<compile_context>
chip_gen: v7x
topology: tpu7x:2x2x1
jax: 0.10.0
libtpu: 0.0.40
codegen_flags: <defaults>
</compile_context>

<pallas_src>
import jax
import jax.numpy as jnp
from jax import lax
from jax.experimental import pallas as pl
from jax.experimental.pallas import tpu as pltpu

EPS = 1e-5
NEG_SLOPE = 0.2


def _leaky_relu(h):
    return jnp.where(h >= 0, h, NEG_SLOPE * h)


def _bn_train_fused(h, gamma, beta, axis=0):
    """Training-mode BatchNorm1d (biased variance, eps=1e-5), one-pass stats,
    affine folded into a single FMA: h*scale + shift.

    `axis` is the reduction (batch) axis: 0 for (B, N) activations, -1 for the
    lane-dense (1, B) layer-3 layout.  All math in f32.
    """
    inv_n = jnp.float32(1.0 / h.shape[axis])
    s1 = jnp.sum(h, axis=axis, keepdims=True)
    s2 = jnp.sum(h * h, axis=axis, keepdims=True)
    mean = s1 * inv_n
    var = jnp.maximum(s2 * inv_n - mean * mean, 0.0)
    scale = lax.rsqrt(var + EPS) * gamma          # fold gamma once
    shift = beta - mean * scale                   # fold beta + mean once
    return h * scale + shift


def discriminator_kernel(x_ref, w1_ref, w2_ref, slab_ref, o_ref):
    # slab layout (8, 256) f32:
    #   row 0: gamma1 (256)      row 1: beta1 (256)
    #   row 2: gamma2 (128)      row 3: beta2 (128)
    #   row 4: w3^T   (128)
    #   row 5 col 0: gamma3      row 6 col 0: beta3
    x = x_ref[...].astype(jnp.bfloat16)           # in-kernel cast, hidden under MXU

    # ---- Layer 1: Linear(512,256) [bias cancelled by BN] + BN + LeakyReLU ----
    h = jnp.dot(x, w1_ref[...], preferred_element_type=jnp.float32)       # (B,256)
    h = _leaky_relu(_bn_train_fused(h, slab_ref[0:1, :], slab_ref[1:2, :], axis=0))

    # ---- Layer 2: Linear(256,128) [bias cancelled by BN] + BN + LeakyReLU ----
    h = jnp.dot(h.astype(jnp.bfloat16), w2_ref[...],
                preferred_element_type=jnp.float32)                       # (B,128)
    h = _leaky_relu(_bn_train_fused(h, slab_ref[2:3, 0:128],
                                    slab_ref[3:4, 0:128], axis=0))

    # ---- Layer 3: Linear(128,1) + BN(1) + Sigmoid, lane-dense ----
    # (1,128) x (B,128)^T -> (1,B): one tiny MXU dot whose result already has
    # the batch on the lane axis, so the store is an unmasked lane-dense vst.
    # Kept in f32 (K=128 only) to match the reference's f32 layer-3 math.
    z = lax.dot_general(slab_ref[4:5, 0:128], h,
                        dimension_numbers=(((1,), (1,)), ((), ())),
                        preferred_element_type=jnp.float32)               # (1, B)
    z = _bn_train_fused(z, slab_ref[5:6, 0:1], slab_ref[6:7, 0:1], axis=1)
    # Exact sigmoid via a single EUP tanh push: sigmoid(z) = 0.5*(1+tanh(z/2)).
    o_ref[...] = (0.5 * (1.0 + jnp.tanh(0.5 * z))).astype(o_ref.dtype)


def discriminator_forward(x, kernel_params):
    """x: (B, 512) float32 -> (B, 1) float32.  B must be > 1 (training-mode BN)."""
    B = x.shape[0]
    vmem = pl.BlockSpec(memory_space=pltpu.MemorySpace.VMEM)
    n_in = 1 + len(kernel_params)
    out_row = pl.pallas_call(
        discriminator_kernel,
        out_shape=jax.ShapeDtypeStruct((1, B), jnp.float32),   # lane-dense store
        in_specs=[vmem] * n_in,
        out_specs=vmem,
    )(x, *kernel_params)
    return out_row.reshape(B, 1)


def init_params(key):
    """Faithful PyTorch-default parameters (f32 weights + biases, BN gamma=1,
    beta=0).  The kernel consumes a packed/bf16 view of these (pack_params)."""
    ks = jax.random.split(key, 6)

    def linear_init(kw, kb, fan_in, fan_out):
        bound = 1.0 / float(fan_in) ** 0.5
        w = jax.random.uniform(kw, (fan_in, fan_out), jnp.float32, -bound, bound)
        b = jax.random.uniform(kb, (fan_out,), jnp.float32, -bound, bound)
        return w, b

    w1, b1 = linear_init(ks[0], ks[1], 512, 256)
    w2, b2 = linear_init(ks[2], ks[3], 256, 128)
    w3, b3 = linear_init(ks[4], ks[5], 128, 1)
    return dict(
        w1=w1, b1=b1, g1=jnp.ones((256,), jnp.float32), be1=jnp.zeros((256,), jnp.float32),
        w2=w2, b2=b2, g2=jnp.ones((128,), jnp.float32), be2=jnp.zeros((128,), jnp.float32),
        w3=w3, b3=b3, g3=jnp.ones((1,), jnp.float32), be3=jnp.zeros((1,), jnp.float32),
    )


def pack_params(p):
    """Kernel-side parameter layout:
      - w1/w2 stored bf16 at rest (MXU operands, half the HBM weight traffic),
      - Linear biases dropped (exactly cancelled by training-mode BN),
      - every small vector packed into ONE (8, 256) f32 slab (see kernel doc).
    NOTE: the bias folding is only valid for training-mode BN; an eval-mode
    (running-stats) variant must keep b1/b2/b3."""
    w1 = p["w1"].astype(jnp.bfloat16)
    w2 = p["w2"].astype(jnp.bfloat16)
    slab = jnp.zeros((8, 256), jnp.float32)
    slab = slab.at[0, :].set(p["g1"])
    slab = slab.at[1, :].set(p["be1"])
    slab = slab.at[2, :128].set(p["g2"])
    slab = slab.at[3, :128].set(p["be2"])
    slab = slab.at[4, :128].set(p["w3"][:, 0])
    slab = slab.at[5, 0].set(p["g3"][0])
    slab = slab.at[6, 0].set(p["be3"][0])
    return (w1, w2, slab)


def _bn_ref(h, gamma, beta):
    mean = jnp.mean(h, axis=0, keepdims=True)
    var = jnp.mean((h - mean) ** 2, axis=0, keepdims=True)
    return (h - mean) * lax.rsqrt(var + EPS) * gamma + beta


def reference_forward(x, p):
    """Plain-JAX reference with the PyTorch module's exact math (biases kept,
    two-pass BN, jax.nn.sigmoid), evaluated with the same bf16 matmul operands
    the kernel uses so the comparison isolates kernel correctness."""
    h = jnp.dot(x.astype(jnp.bfloat16), p["w1"].astype(jnp.bfloat16),
                preferred_element_type=jnp.float32) + p["b1"]
    h = _leaky_relu(_bn_ref(h, p["g1"], p["be1"]))
    h = jnp.dot(h.astype(jnp.bfloat16), p["w2"].astype(jnp.bfloat16),
                preferred_element_type=jnp.float32) + p["b2"]
    h = _leaky_relu(_bn_ref(h, p["g2"], p["be2"]))
    h = jnp.dot(h, p["w3"], preferred_element_type=jnp.float32) + p["b3"]
    h = _bn_ref(h, p["g3"], p["be3"])
    return jax.nn.sigmoid(h)


if __name__ == "__main__":
    key = jax.random.PRNGKey(0)
    kx, kp = jax.random.split(key)

    # BatchNorm1d training mode needs B > 1.  (For throughput, real callers
    # should batch to M >= 256 so the MXU sees full tiles; B=8 here is a
    # correctness-sized demo.)
    B = 8
    x = jax.random.normal(kx, (B, 512), jnp.float32)

    params = init_params(kp)
    kernel_params = pack_params(params)

    out = discriminator_forward(x, kernel_params)
    out = jax.block_until_ready(out)

    ref = reference_forward(x, params)
    assert out.shape == (B, 1)
    max_diff = float(jnp.max(jnp.abs(out - ref)))
    assert jnp.allclose(out, ref, rtol=3e-3, atol=3e-3), \
        f"mismatch vs JAX reference, max abs diff = {max_diff}"

    print("KERNEL_OK")
</pallas_src>

<mosaic_0001>
module attributes {stable_mosaic.version = 11 : i64} {
  func.func @discriminator_kernel(%arg0: memref<8x512xf32, #tpu.memory_space<vmem>>, %arg1: memref<512x256xbf16, #tpu.memory_space<vmem>>, %arg2: memref<256x128xbf16, #tpu.memory_space<vmem>>, %arg3: memref<8x256xf32, #tpu.memory_space<vmem>>, %arg4: memref<1x8xf32, #tpu.memory_space<vmem>>) attributes {dimension_semantics = [], scalar_prefetch = 0 : i64, scratch_operands = 0 : i64, tpu.core_type = #tpu.core_type<tc>} {
    %c0 = arith.constant 0 : index
    %c0_0 = arith.constant 0 : index
    %0 = vector.load %arg0[%c0, %c0_0] : memref<8x512xf32, #tpu.memory_space<vmem>>, vector<8x512xf32>
    %1 = arith.truncf %0 : vector<8x512xf32> to vector<8x512xbf16>
    %c0_1 = arith.constant 0 : index
    %c0_2 = arith.constant 0 : index
    %2 = vector.load %arg1[%c0_1, %c0_2] : memref<512x256xbf16, #tpu.memory_space<vmem>>, vector<512x256xbf16>
    %cst = arith.constant dense<0.000000e+00> : vector<8x256xf32>
    %3 = tpu.matmul %1, %2, %cst {dimension_numbers = #tpu.dot_dimension_numbers<[1], [0], [0], [1], [0, 0, 1, 1], [], []>} : vector<8x512xbf16>, vector<512x256xbf16>, vector<8x256xf32> -> vector<8x256xf32>
    %c0_3 = arith.constant 0 : index
    %c0_4 = arith.constant 0 : index
    %4 = vector.load %arg3[%c0_3, %c0_4] : memref<8x256xf32, #tpu.memory_space<vmem>>, vector<1x256xf32>
    %c1 = arith.constant 1 : index
    %c0_5 = arith.constant 0 : index
    %5 = vector.load %arg3[%c1, %c0_5] : memref<8x256xf32, #tpu.memory_space<vmem>>, vector<1x256xf32>
    %cst_6 = arith.constant dense<0.000000e+00> : vector<256xf32>
    %6 = vector.multi_reduction <add>, %3, %cst_6 [0] : vector<8x256xf32> to vector<256xf32>
    %7 = vector.shape_cast %6 : vector<256xf32> to vector<1x256xf32>
    %8 = arith.mulf %3, %3 : vector<8x256xf32>
    %cst_7 = arith.constant dense<0.000000e+00> : vector<256xf32>
    %9 = vector.multi_reduction <add>, %8, %cst_7 [0] : vector<8x256xf32> to vector<256xf32>
    %10 = vector.shape_cast %9 : vector<256xf32> to vector<1x256xf32>
    %cst_8 = arith.constant 1.250000e-01 : f32
    %11 = vector.broadcast %cst_8 : f32 to vector<1x256xf32>
    %12 = arith.mulf %7, %11 : vector<1x256xf32>
    %cst_9 = arith.constant 1.250000e-01 : f32
    %13 = vector.broadcast %cst_9 : f32 to vector<1x256xf32>
    %14 = arith.mulf %10, %13 : vector<1x256xf32>
    %15 = arith.mulf %12, %12 : vector<1x256xf32>
    %16 = arith.subf %14, %15 : vector<1x256xf32>
    %cst_10 = arith.constant 0.000000e+00 : f32
    %17 = vector.broadcast %cst_10 : f32 to vector<1x256xf32>
    %18 = arith.maximumf %16, %17 : vector<1x256xf32>
    %cst_11 = arith.constant 9.99999974E-6 : f32
    %19 = vector.broadcast %cst_11 : f32 to vector<1x256xf32>
    %20 = arith.addf %18, %19 : vector<1x256xf32>
    %21 = math.rsqrt %20 : vector<1x256xf32>
    %22 = arith.mulf %21, %4 : vector<1x256xf32>
    %23 = arith.mulf %12, %22 : vector<1x256xf32>
    %24 = arith.subf %5, %23 : vector<1x256xf32>
    %25 = vector.broadcast %22 : vector<1x256xf32> to vector<8x256xf32>
    %26 = arith.mulf %3, %25 : vector<8x256xf32>
    %27 = vector.broadcast %24 : vector<1x256xf32> to vector<8x256xf32>
    %28 = arith.addf %26, %27 : vector<8x256xf32>
    %cst_12 = arith.constant 0.000000e+00 : f32
    %29 = vector.broadcast %cst_12 : f32 to vector<8x256xf32>
    %30 = arith.cmpf oge, %28, %29 : vector<8x256xf32>
    %cst_13 = arith.constant 2.000000e-01 : f32
    %31 = vector.broadcast %cst_13 : f32 to vector<8x256xf32>
    %32 = arith.mulf %31, %28 : vector<8x256xf32>
    %33 = arith.select %30, %28, %32 : vector<8x256xi1>, vector<8x256xf32>
    %34 = arith.truncf %33 : vector<8x256xf32> to vector<8x256xbf16>
    %c0_14 = arith.constant 0 : index
    %c0_15 = arith.constant 0 : index
    %35 = vector.load %arg2[%c0_14, %c0_15] : memref<256x128xbf16, #tpu.memory_space<vmem>>, vector<256x128xbf16>
    %cst_16 = arith.constant dense<0.000000e+00> : vector<8x128xf32>
    %36 = tpu.matmul %34, %35, %cst_16 {dimension_numbers = #tpu.dot_dimension_numbers<[1], [0], [0], [1], [0, 0, 1, 1], [], []>} : vector<8x256xbf16>, vector<256x128xbf16>, vector<8x128xf32> -> vector<8x128xf32>
    %c2 = arith.constant 2 : index
    %c0_17 = arith.constant 0 : index
    %37 = vector.load %arg3[%c2, %c0_17] : memref<8x256xf32, #tpu.memory_space<vmem>>, vector<1x128xf32>
    %c3 = arith.constant 3 : index
    %c0_18 = arith.constant 0 : index
    %38 = vector.load %arg3[%c3, %c0_18] : memref<8x256xf32, #tpu.memory_space<vmem>>, vector<1x128xf32>
    %cst_19 = arith.constant dense<0.000000e+00> : vector<128xf32>
    %39 = vector.multi_reduction <add>, %36, %cst_19 [0] : vector<8x128xf32> to vector<128xf32>
    %40 = vector.shape_cast %39 : vector<128xf32> to vector<1x128xf32>
    %41 = arith.mulf %36, %36 : vector<8x128xf32>
    %cst_20 = arith.constant dense<0.000000e+00> : vector<128xf32>
    %42 = vector.multi_reduction <add>, %41, %cst_20 [0] : vector<8x128xf32> to vector<128xf32>
    %43 = vector.shape_cast %42 : vector<128xf32> to vector<1x128xf32>
    %cst_21 = arith.constant 1.250000e-01 : f32
    %44 = vector.broadcast %cst_21 : f32 to vector<1x128xf32>
    %45 = arith.mulf %40, %44 : vector<1x128xf32>
    %cst_22 = arith.constant 1.250000e-01 : f32
    %46 = vector.broadcast %cst_22 : f32 to vector<1x128xf32>
    %47 = arith.mulf %43, %46 : vector<1x128xf32>
    %48 = arith.mulf %45, %45 : vector<1x128xf32>
    %49 = arith.subf %47, %48 : vector<1x128xf32>
    %cst_23 = arith.constant 0.000000e+00 : f32
    %50 = vector.broadcast %cst_23 : f32 to vector<1x128xf32>
    %51 = arith.maximumf %49, %50 : vector<1x128xf32>
    %cst_24 = arith.constant 9.99999974E-6 : f32
    %52 = vector.broadcast %cst_24 : f32 to vector<1x128xf32>
    %53 = arith.addf %51, %52 : vector<1x128xf32>
    %54 = math.rsqrt %53 : vector<1x128xf32>
    %55 = arith.mulf %54, %37 : vector<1x128xf32>
    %56 = arith.mulf %45, %55 : vector<1x128xf32>
    %57 = arith.subf %38, %56 : vector<1x128xf32>
    %58 = vector.broadcast %55 : vector<1x128xf32> to vector<8x128xf32>
    %59 = arith.mulf %36, %58 : vector<8x128xf32>
    %60 = vector.broadcast %57 : vector<1x128xf32> to vector<8x128xf32>
    %61 = arith.addf %59, %60 : vector<8x128xf32>
    %cst_25 = arith.constant 0.000000e+00 : f32
    %62 = vector.broadcast %cst_25 : f32 to vector<8x128xf32>
    %63 = arith.cmpf oge, %61, %62 : vector<8x128xf32>
    %cst_26 = arith.constant 2.000000e-01 : f32
    %64 = vector.broadcast %cst_26 : f32 to vector<8x128xf32>
    %65 = arith.mulf %64, %61 : vector<8x128xf32>
    %66 = arith.select %63, %61, %65 : vector<8x128xi1>, vector<8x128xf32>
    %c4 = arith.constant 4 : index
    %c0_27 = arith.constant 0 : index
    %67 = vector.load %arg3[%c4, %c0_27] : memref<8x256xf32, #tpu.memory_space<vmem>>, vector<1x128xf32>
    %cst_28 = arith.constant dense<0.000000e+00> : vector<1x8xf32>
    %68 = tpu.matmul %67, %66, %cst_28 {dimension_numbers = #tpu.dot_dimension_numbers<[1], [1], [0], [0], [0, 0, 1, 0], [], []>} : vector<1x128xf32>, vector<8x128xf32>, vector<1x8xf32> -> vector<1x8xf32>
    %c5 = arith.constant 5 : index
    %c0_29 = arith.constant 0 : index
    %69 = vector.load %arg3[%c5, %c0_29] : memref<8x256xf32, #tpu.memory_space<vmem>>, vector<1x1xf32>
    %c6 = arith.constant 6 : index
    %c0_30 = arith.constant 0 : index
    %70 = vector.load %arg3[%c6, %c0_30] : memref<8x256xf32, #tpu.memory_space<vmem>>, vector<1x1xf32>
    %cst_31 = arith.constant dense<0.000000e+00> : vector<1xf32>
    %71 = vector.multi_reduction <add>, %68, %cst_31 [1] : vector<1x8xf32> to vector<1xf32>
    %72 = vector.shape_cast %71 : vector<1xf32> to vector<1x1xf32>
    %73 = arith.mulf %68, %68 : vector<1x8xf32>
    %cst_32 = arith.constant dense<0.000000e+00> : vector<1xf32>
    %74 = vector.multi_reduction <add>, %73, %cst_32 [1] : vector<1x8xf32> to vector<1xf32>
    %75 = vector.shape_cast %74 : vector<1xf32> to vector<1x1xf32>
    %cst_33 = arith.constant 1.250000e-01 : f32
    %76 = vector.broadcast %cst_33 : f32 to vector<1x1xf32>
    %77 = arith.mulf %72, %76 : vector<1x1xf32>
    %cst_34 = arith.constant 1.250000e-01 : f32
    %78 = vector.broadcast %cst_34 : f32 to vector<1x1xf32>
    %79 = arith.mulf %75, %78 : vector<1x1xf32>
    %80 = arith.mulf %77, %77 : vector<1x1xf32>
    %81 = arith.subf %79, %80 : vector<1x1xf32>
    %cst_35 = arith.constant 0.000000e+00 : f32
    %82 = vector.broadcast %cst_35 : f32 to vector<1x1xf32>
    %83 = arith.maximumf %81, %82 : vector<1x1xf32>
    %cst_36 = arith.constant 9.99999974E-6 : f32
    %84 = vector.broadcast %cst_36 : f32 to vector<1x1xf32>
    %85 = arith.addf %83, %84 : vector<1x1xf32>
    %86 = math.rsqrt %85 : vector<1x1xf32>
    %87 = arith.mulf %86, %69 : vector<1x1xf32>
    %88 = arith.mulf %77, %87 : vector<1x1xf32>
    %89 = arith.subf %70, %88 : vector<1x1xf32>
    %90 = vector.broadcast %87 : vector<1x1xf32> to vector<1x8xf32>
    %91 = arith.mulf %68, %90 : vector<1x8xf32>
    %92 = vector.broadcast %89 : vector<1x1xf32> to vector<1x8xf32>
    %93 = arith.addf %91, %92 : vector<1x8xf32>
    %cst_37 = arith.constant 5.000000e-01 : f32
    %94 = vector.broadcast %cst_37 : f32 to vector<1x8xf32>
    %95 = arith.mulf %94, %93 : vector<1x8xf32>
    %96 = math.tanh %95 : vector<1x8xf32>
    %cst_38 = arith.constant 1.000000e+00 : f32
    %97 = vector.broadcast %cst_38 : f32 to vector<1x8xf32>
    %98 = arith.addf %97, %96 : vector<1x8xf32>
    %cst_39 = arith.constant 5.000000e-01 : f32
    %99 = vector.broadcast %cst_39 : f32 to vector<1x8xf32>
    %100 = arith.mulf %99, %98 : vector<1x8xf32>
    %c0_40 = arith.constant 0 : index
    %c0_41 = arith.constant 0 : index
    %101 = vector.load %arg4[%c0_40, %c0_41] : memref<1x8xf32, #tpu.memory_space<vmem>>, vector<1x8xf32>
    tpu.vector_store %arg4[%c0_40, %c0_41], %100 {strides = array<i32>} : memref<1x8xf32, #tpu.memory_space<vmem>>, vector<1x8xf32>,
    return
  }
}

</mosaic_0001>

<llo_original>
// kernel: tpu_custom_call.1
$region0: #{tpu_custom_call.1}
  #allocation0 [shape = 'u32[]', space=smem, size = 0x4, offset = 0x4, fixed_abs, tag = 'smem constant byte address 0x4 - core index']
  #allocation1 [shape = 'u32[144,128]{1,0:T(1,128)}', space=vmem, size = 0x12000, scoped, tag = 'internal scratch']
  %s0 = inlined_call_operand.hbm [shape: f32[8,512], index: 0, kind: input, shape index: {}]
  %s1 = inlined_call_operand.hbm [shape: bf16[512,256], index: 1, kind: input, shape index: {}]
  %s2 = inlined_call_operand.hbm [shape: bf16[256,128], index: 2, kind: input, shape index: {}]
  %s3 = inlined_call_operand.hbm [shape: f32[8,256], index: 3, kind: input, shape index: {}]
  %s4 = inlined_call_operand.hbm [shape: f32[1,8], index: 4, kind: output, shape index: {}]
  %s5 = sld [smem:[#allocation0]]
  $region42: #{tpu_custom_call.1} parent=0
    _
  %s7 = ssub.s32 1, %s5
  %s8 = scalar_select 0, %s7, %s5
  $region1: #{tpu_custom_call.1} parent=0
    #allocation2 [shape = 'u8[16384]{0}', space=vmem, size = 0x4000, scoped, tag = 'input window, operand 0, single buffered']
    #allocation3 [shape = 's32[1]{0}', space=sflag, size = 0x4, scoped, tag = 'scoped memory for tpu_custom_call.1']
    #allocation4 [shape = 's32[1]{0}', space=sflag, size = 0x4, scoped, tag = 'scoped memory for tpu_custom_call.1']
    #allocation5 [shape = 'u8[262144]{0}', space=vmem, size = 0x40000, scoped, tag = 'input window, operand 1, single buffered']
    #allocation6 [shape = 's32[1]{0}', space=sflag, size = 0x4, scoped, tag = 'scoped memory for tpu_custom_call.1']
    #allocation7 [shape = 'u8[65536]{0}', space=vmem, size = 0x10000, scoped, tag = 'input window, operand 2, single buffered']
    #allocation8 [shape = 'u8[8192]{0}', space=vmem, size = 0x2000, scoped, tag = 'input window, operand 3, single buffered']
    #allocation9 [shape = 's32[1]{0}', space=sflag, size = 0x4, scoped, tag = 'scoped memory for tpu_custom_call.1']
    #allocation10 [shape = 'u8[512]{0}', space=vmem, size = 0x400, scoped, tag = 'output window, operand 0, single buffered']
    %9 = vsyncpa [#allocation3], 0
    %10 = vsyncpa [#allocation6], 0
    %11 = vsyncpa [#allocation9], 0
    %12 = vsyncpa [#allocation4], 0
    // Predicated region
    $region2: #{tpu_custom_call.1} parent=1 // pred_check
      _
    $region3: #{tpu_custom_call.1} parent=1 // pred_check_branch
      %14 = sbr.rel (0) target = $region5
    $region4: #{tpu_custom_call.1} parent=1 // pred_region
      %s16 = ssub.s32 512, 512
      %17 = vsyncadd [#allocation3], %s16
      %s19 = sshll.u32 [#allocation2], 4
      %s20 = int_to_ptr.vmem [resolvable:$true] %s19
      %22 = dma.hbm_to_vmem [thread:$0]  %s0, 512, %s20, [#allocation3]
    $region5: #{tpu_custom_call.1} parent=1 // pred_fallthru
      _
    // Predicated region
    $region6: #{tpu_custom_call.1} parent=1 // pred_check
      _
    $region7: #{tpu_custom_call.1} parent=1 // pred_check_branch
      %24 = sbr.rel (0) target = $region9
    $region8: #{tpu_custom_call.1} parent=1 // pred_region
      %s26 = ssub.s32 8192, 8192
      %27 = vsyncadd [#allocation6], %s26
      %s28 = sshll.u32 [#allocation5], 4
      %s29 = int_to_ptr.vmem [resolvable:$true] %s28
      %34 = dma.hbm_to_vmem [thread:$0]  %s1, 8192, %s29, [#allocation6], 128, 128, 8
    $region9: #{tpu_custom_call.1} parent=1 // pred_fallthru
      _
    // Predicated region
    $region10: #{tpu_custom_call.1} parent=1 // pred_check
      _
    $region11: #{tpu_custom_call.1} parent=1 // pred_check_branch
      %36 = sbr.rel (0) target = $region13
    $region12: #{tpu_custom_call.1} parent=1 // pred_region
      %s38 = ssub.s32 2048, 2048
      %39 = vsyncadd [#allocation6], %s38
      %s40 = sshll.u32 [#allocation7], 4
      %s41 = int_to_ptr.vmem [resolvable:$true] %s40
      %46 = dma.hbm_to_vmem [thread:$0]  %s2, 2048, %s41, [#allocation6], 64, 64, 4
    $region13: #{tpu_custom_call.1} parent=1 // pred_fallthru
      _
    // Predicated region
    $region14: #{tpu_custom_call.1} parent=1 // pred_check
      _
    $region15: #{tpu_custom_call.1} parent=1 // pred_check_branch
      %48 = sbr.rel (0) target = $region17
    $region16: #{tpu_custom_call.1} parent=1 // pred_region
      %s50 = ssub.s32 256, 256
      %51 = vsyncadd [#allocation9], %s50
      %s53 = sshll.u32 [#allocation8], 4
      %s54 = int_to_ptr.vmem [resolvable:$true] %s53
      %56 = dma.hbm_to_vmem [thread:$0]  %s3, 256, %s54, [#allocation9]
    $region17: #{tpu_custom_call.1} parent=1 // pred_fallthru
      _
    // Predicated region
    $region18: #{tpu_custom_call.1} parent=1 // pred_check
      _
    $region19: #{tpu_custom_call.1} parent=1 // pred_check_branch
      %58 = sbr.rel (0) target = $region21
    $region20: #{tpu_custom_call.1} parent=1 // pred_region
      %59 = dma.done [#allocation3], 512
    $region21: #{tpu_custom_call.1} parent=1 // pred_fallthru
      _
    // Predicated region
    $region22: #{tpu_custom_call.1} parent=1 // pred_check
      _
    $region23: #{tpu_custom_call.1} parent=1 // pred_check_branch
      %61 = sbr.rel (0) target = $region25
    $region24: #{tpu_custom_call.1} parent=1 // pred_region
      %62 = dma.done [#allocation6], 8192
    $region25: #{tpu_custom_call.1} parent=1 // pred_fallthru
      _
    // Predicated region
    $region26: #{tpu_custom_call.1} parent=1 // pred_check
      _
    $region27: #{tpu_custom_call.1} parent=1 // pred_check_branch
      %64 = sbr.rel (0) target = $region29
    $region28: #{tpu_custom_call.1} parent=1 // pred_region
      %65 = dma.done [#allocation6], 2048
    $region29: #{tpu_custom_call.1} parent=1 // pred_fallthru
      _
    // Predicated region
    $region30: #{tpu_custom_call.1} parent=1 // pred_check
      _
    $region31: #{tpu_custom_call.1} parent=1 // pred_check_branch
      %67 = sbr.rel (0) target = $region33
    $region32: #{tpu_custom_call.1} parent=1 // pred_region
      %68 = dma.done [#allocation9], 256
    $region33: #{tpu_custom_call.1} parent=1 // pred_fallthru
      _
    %v70 = vld [vmem:[#allocation2] sm:$0xff]
    %v71 = vld [vmem:[#allocation2 + $0x8] sm:$0xff]
    %v72 = vld [vmem:[#allocation2 + $0x10] sm:$0xff]
    %v73 = vld [vmem:[#allocation2 + $0x18] sm:$0xff]
    %v74 = vpack.c.bf16 %v70, %v70
    %v75 = vpack.c.bf16 %v71, %v71
    %v76 = vpack.c.bf16 %v72, %v72
    %v77 = vpack.c.bf16 %v73, %v73
    %v78 = vld [vmem:[#allocation5] sm:$0xff]
    %v79 = vld [vmem:[#allocation5 + $0x8] sm:$0xff]
    %v80 = vld [vmem:[#allocation5 + $0x10] sm:$0xff]
    %v81 = vld [vmem:[#allocation5 + $0x18] sm:$0xff]
    %v82 = vld [vmem:[#allocation5 + $0x20] sm:$0xff]
    %v83 = vld [vmem:[#allocation5 + $0x28] sm:$0xff]
    %v84 = vld [vmem:[#allocation5 + $0x30] sm:$0xff]
    %v85 = vld [vmem:[#allocation5 + $0x38] sm:$0xff]
    %v86 = vld [vmem:[#allocation5 + $0x40] sm:$0xff]
    %v87 = vld [vmem:[#allocation5 + $0x48] sm:$0xff]
    %v88 = vld [vmem:[#allocation5 + $0x50] sm:$0xff]
    %v89 = vld [vmem:[#allocation5 + $0x58] sm:$0xff]
    %v90 = vld [vmem:[#allocation5 + $0x60] sm:$0xff]
    %v91 = vld [vmem:[#allocation5 + $0x68] sm:$0xff]
    %v92 = vld [vmem:[#allocation5 + $0x70] sm:$0xff]
    %v93 = vld [vmem:[#allocation5 + $0x78] sm:$0xff]
    %v94 = vld [vmem:[#allocation5 + $0x80] sm:$0xff]
    %v95 = vld [vmem:[#allocation5 + $0x88] sm:$0xff]
    %v96 = vld [vmem:[#allocation5 + $0x90] sm:$0xff]
    %v97 = vld [vmem:[#allocation5 + $0x98] sm:$0xff]
    %v98 = vld [vmem:[#allocation5 + $0xa0] sm:$0xff]
    %v99 = vld [vmem:[#allocation5 + $0xa8] sm:$0xff]
    %v100 = vld [vmem:[#allocation5 + $0xb0] sm:$0xff]
    %v101 = vld [vmem:[#allocation5 + $0xb8] sm:$0xff]
    %v102 = vld [vmem:[#allocation5 + $0xc0] sm:$0xff]
    %v103 = vld [vmem:[#allocation5 + $0xc8] sm:$0xff]
    %v104 = vld [vmem:[#allocation5 + $0xd0] sm:$0xff]
    %v105 = vld [vmem:[#allocation5 + $0xd8] sm:$0xff]
    %v106 = vld [vmem:[#allocation5 + $0xe0] sm:$0xff]
    %v107 = vld [vmem:[#allocation5 + $0xe8] sm:$0xff]
    %v108 = vld [vmem:[#allocation5 + $0xf0] sm:$0xff]
    %v109 = vld [vmem:[#allocation5 + $0xf8] sm:$0xff]
    %v110 = vld [vmem:[#allocation5 + $0x100] sm:$0xff]
    %v111 = vld [vmem:[#allocation5 + $0x108] sm:$0xff]
    %v112 = vld [vmem:[#allocation5 + $0x110] sm:$0xff]
    %v113 = vld [vmem:[#allocation5 + $0x118] sm:$0xff]
    %v114 = vld [vmem:[#allocation5 + $0x120] sm:$0xff]
    %v115 = vld [vmem:[#allocation5 + $0x128] sm:$0xff]
    %v116 = vld [vmem:[#allocation5 + $0x130] sm:$0xff]
    %v117 = vld [vmem:[#allocation5 + $0x138] sm:$0xff]
    %v118 = vld [vmem:[#allocation5 + $0x140] sm:$0xff]
    %v119 = vld [vmem:[#allocation5 + $0x148] sm:$0xff]
    %v120 = vld [vmem:[#allocation5 + $0x150] sm:$0xff]
    %v121 = vld [vmem:[#allocation5 + $0x158] sm:$0xff]
    %v122 = vld [vmem:[#allocation5 + $0x160] sm:$0xff]
    %v123 = vld [vmem:[#allocation5 + $0x168] sm:$0xff]
    %v124 = vld [vmem:[#allocation5 + $0x170] sm:$0xff]
    %v125 = vld [vmem:[#allocation5 + $0x178] sm:$0xff]
    %v126 = vld [vmem:[#allocation5 + $0x180] sm:$0xff]
    %v127 = vld [vmem:[#allocation5 + $0x188] sm:$0xff]
    %v128 = vld [vmem:[#allocation5 + $0x190] sm:$0xff]
    %v129 = vld [vmem:[#allocation5 + $0x198] sm:$0xff]
    %v130 = vld [vmem:[#allocation5 + $0x1a0] sm:$0xff]
    %v131 = vld [vmem:[#allocation5 + $0x1a8] sm:$0xff]
    %v132 = vld [vmem:[#allocation5 + $0x1b0] sm:$0xff]
    %v133 = vld [vmem:[#allocation5 + $0x1b8] sm:$0xff]
    %v134 = vld [vmem:[#allocation5 + $0x1c0] sm:$0xff]
    %v135 = vld [vmem:[#allocation5 + $0x1c8] sm:$0xff]
    %v136 = vld [vmem:[#allocation5 + $0x1d0] sm:$0xff]
    %v137 = vld [vmem:[#allocation5 + $0x1d8] sm:$0xff]
    %v138 = vld [vmem:[#allocation5 + $0x1e0] sm:$0xff]
    %v139 = vld [vmem:[#allocation5 + $0x1e8] sm:$0xff]
    %v140 = vld [vmem:[#allocation5 + $0x1f0] sm:$0xff]
    %v141 = vld [vmem:[#allocation5 + $0x1f8] sm:$0xff]
    %v206 = vunpack.c.l.b16 %v78
    %v207 = vunpack.c.h.b16 %v78
    %v208 = vunpack.c.l.b16 %v79
    %v209 = vunpack.c.h.b16 %v79
    %v210 = vunpack.c.l.b16 %v80
    %v211 = vunpack.c.h.b16 %v80
    %v212 = vunpack.c.l.b16 %v81
    %v213 = vunpack.c.h.b16 %v81
    %v214 = vunpack.c.l.b16 %v82
    %v215 = vunpack.c.h.b16 %v82
    %v216 = vunpack.c.l.b16 %v83
    %v217 = vunpack.c.h.b16 %v83
    %v218 = vunpack.c.l.b16 %v84
    %v219 = vunpack.c.h.b16 %v84
    %v220 = vunpack.c.l.b16 %v85
    %v221 = vunpack.c.h.b16 %v85
    %v222 = vunpack.c.l.b16 %v86
    %v223 = vunpack.c.h.b16 %v86
    %v224 = vunpack.c.l.b16 %v87
    %v225 = vunpack.c.h.b16 %v87
    %v226 = vunpack.c.l.b16 %v88
    %v227 = vunpack.c.h.b16 %v88
    %v228 = vunpack.c.l.b16 %v89
    %v229 = vunpack.c.h.b16 %v89
    %v230 = vunpack.c.l.b16 %v90
    %v231 = vunpack.c.h.b16 %v90
    %v232 = vunpack.c.l.b16 %v91
    %v233 = vunpack.c.h.b16 %v91
    %v234 = vunpack.c.l.b16 %v92
    %v235 = vunpack.c.h.b16 %v92
    %v236 = vunpack.c.l.b16 %v93
    %v237 = vunpack.c.h.b16 %v93
    %v238 = vunpack.c.l.b16 %v94
    %v239 = vunpack.c.h.b16 %v94
    %v240 = vunpack.c.l.b16 %v95
    %v241 = vunpack.c.h.b16 %v95
    %v242 = vunpack.c.l.b16 %v96
    %v243 = vunpack.c.h.b16 %v96
    %v244 = vunpack.c.l.b16 %v97
    %v245 = vunpack.c.h.b16 %v97
    %v246 = vunpack.c.l.b16 %v98
    %v247 = vunpack.c.h.b16 %v98
    %v248 = vunpack.c.l.b16 %v99
    %v249 = vunpack.c.h.b16 %v99
    %v250 = vunpack.c.l.b16 %v100
    %v251 = vunpack.c.h.b16 %v100
    %v252 = vunpack.c.l.b16 %v101
    %v253 = vunpack.c.h.b16 %v101
    %v254 = vunpack.c.l.b16 %v102
    %v255 = vunpack.c.h.b16 %v102
    %v256 = vunpack.c.l.b16 %v103
    %v257 = vunpack.c.h.b16 %v103
    %v258 = vunpack.c.l.b16 %v104
    %v259 = vunpack.c.h.b16 %v104
    %v260 = vunpack.c.l.b16 %v105
    %v261 = vunpack.c.h.b16 %v105
    %v262 = vunpack.c.l.b16 %v106
    %v263 = vunpack.c.h.b16 %v106
    %v264 = vunpack.c.l.b16 %v107
    %v265 = vunpack.c.h.b16 %v107
    %v266 = vunpack.c.l.b16 %v108
    %v267 = vunpack.c.h.b16 %v108
    %v268 = vunpack.c.l.b16 %v109
    %v269 = vunpack.c.h.b16 %v109
    %v270 = vunpack.c.l.b16 %v110
    %v271 = vunpack.c.h.b16 %v110
    %v272 = vunpack.c.l.b16 %v111
    %v273 = vunpack.c.h.b16 %v111
    %v274 = vunpack.c.l.b16 %v112
    %v275 = vunpack.c.h.b16 %v112
    %v276 = vunpack.c.l.b16 %v113
    %v277 = vunpack.c.h.b16 %v113
    %v278 = vunpack.c.l.b16 %v114
    %v279 = vunpack.c.h.b16 %v114
    %v280 = vunpack.c.l.b16 %v115
    %v281 = vunpack.c.h.b16 %v115
    %v282 = vunpack.c.l.b16 %v116
    %v283 = vunpack.c.h.b16 %v116
    %v284 = vunpack.c.l.b16 %v117
    %v285 = vunpack.c.h.b16 %v117
    %v286 = vunpack.c.l.b16 %v118
    %v287 = vunpack.c.h.b16 %v118
    %v288 = vunpack.c.l.b16 %v119
    %v289 = vunpack.c.h.b16 %v119
    %v290 = vunpack.c.l.b16 %v120
    %v291 = vunpack.c.h.b16 %v120
    %v292 = vunpack.c.l.b16 %v121
    %v293 = vunpack.c.h.b16 %v121
    %v294 = vunpack.c.l.b16 %v122
    %v295 = vunpack.c.h.b16 %v122
    %v296 = vunpack.c.l.b16 %v123
    %v297 = vunpack.c.h.b16 %v123
    %v298 = vunpack.c.l.b16 %v124
    %v299 = vunpack.c.h.b16 %v124
    %v300 = vunpack.c.l.b16 %v125
    %v301 = vunpack.c.h.b16 %v125
    %v302 = vunpack.c.l.b16 %v126
    %v303 = vunpack.c.h.b16 %v126
    %v304 = vunpack.c.l.b16 %v127
    %v305 = vunpack.c.h.b16 %v127
    %v306 = vunpack.c.l.b16 %v128
    %v307 = vunpack.c.h.b16 %v128
    %v308 = vunpack.c.l.b16 %v129
    %v309 = vunpack.c.h.b16 %v129
    %v310 = vunpack.c.l.b16 %v130
    %v311 = vunpack.c.h.b16 %v130
    %v312 = vunpack.c.l.b16 %v131
    %v313 = vunpack.c.h.b16 %v131
    %v314 = vunpack.c.l.b16 %v132
    %v315 = vunpack.c.h.b16 %v132
    %v316 = vunpack.c.l.b16 %v133
    %v317 = vunpack.c.h.b16 %v133
    %v318 = vunpack.c.l.b16 %v134
    %v319 = vunpack.c.h.b16 %v134
    %v320 = vunpack.c.l.b16 %v135
    %v321 = vunpack.c.h.b16 %v135
    %v322 = vunpack.c.l.b16 %v136
    %v323 = vunpack.c.h.b16 %v136
    %v324 = vunpack.c.l.b16 %v137
    %v325 = vunpack.c.h.b16 %v137
    %v326 = vunpack.c.l.b16 %v138
    %v327 = vunpack.c.h.b16 %v138
    %v328 = vunpack.c.l.b16 %v139
    %v329 = vunpack.c.h.b16 %v139
    %v330 = vunpack.c.l.b16 %v140
    %v331 = vunpack.c.h.b16 %v140
    %v332 = vunpack.c.l.b16 %v141
    %v333 = vunpack.c.h.b16 %v141
    %v334 = vpack.c.b16 %v208, %v206
    %v335 = vpack.c.b16 %v209, %v207
    %v336 = vpack.c.b16 %v212, %v210
    %v337 = vpack.c.b16 %v213, %v211
    %v338 = vpack.c.b16 %v216, %v214
    %v339 = vpack.c.b16 %v217, %v215
    %v340 = vpack.c.b16 %v220, %v218
    %v341 = vpack.c.b16 %v221, %v219
    %v342 = vpack.c.b16 %v224, %v222
    %v343 = vpack.c.b16 %v225, %v223
    %v344 = vpack.c.b16 %v228, %v226
    %v345 = vpack.c.b16 %v229, %v227
    %v346 = vpack.c.b16 %v232, %v230
    %v347 = vpack.c.b16 %v233, %v231
    %v348 = vpack.c.b16 %v236, %v234
    %v349 = vpack.c.b16 %v237, %v235
    %v350 = vpack.c.b16 %v240, %v238
    %v351 = vpack.c.b16 %v241, %v239
    %v352 = vpack.c.b16 %v244, %v242
    %v353 = vpack.c.b16 %v245, %v243
    %v354 = vpack.c.b16 %v248, %v246
    %v355 = vpack.c.b16 %v249, %v247
    %v356 = vpack.c.b16 %v252, %v250
    %v357 = vpack.c.b16 %v253, %v251
    %v358 = vpack.c.b16 %v256, %v254
    %v359 = vpack.c.b16 %v257, %v255
    %v360 = vpack.c.b16 %v260, %v258
    %v361 = vpack.c.b16 %v261, %v259
    %v362 = vpack.c.b16 %v264, %v262
    %v363 = vpack.c.b16 %v265, %v263
    %v364 = vpack.c.b16 %v268, %v266
    %v365 = vpack.c.b16 %v269, %v267
    %v366 = vpack.c.b16 %v272, %v270
    %v367 = vpack.c.b16 %v273, %v271
    %v368 = vpack.c.b16 %v276, %v274
    %v369 = vpack.c.b16 %v277, %v275
    %v370 = vpack.c.b16 %v280, %v278
    %v371 = vpack.c.b16 %v281, %v279
    %v372 = vpack.c.b16 %v284, %v282
    %v373 = vpack.c.b16 %v285, %v283
    %v374 = vpack.c.b16 %v288, %v286
    %v375 = vpack.c.b16 %v289, %v287
    %v376 = vpack.c.b16 %v292, %v290
    %v377 = vpack.c.b16 %v293, %v291
    %v378 = vpack.c.b16 %v296, %v294
    %v379 = vpack.c.b16 %v297, %v295
    %v380 = vpack.c.b16 %v300, %v298
    %v381 = vpack.c.b16 %v301, %v299
    %v382 = vpack.c.b16 %v304, %v302
    %v383 = vpack.c.b16 %v305, %v303
    %v384 = vpack.c.b16 %v308, %v306
    %v385 = vpack.c.b16 %v309, %v307
    %v386 = vpack.c.b16 %v312, %v310
    %v387 = vpack.c.b16 %v313, %v311
    %v388 = vpack.c.b16 %v316, %v314
    %v389 = vpack.c.b16 %v317, %v315
    %v390 = vpack.c.b16 %v320, %v318
    %v391 = vpack.c.b16 %v321, %v319
    %v392 = vpack.c.b16 %v324, %v322
    %v393 = vpack.c.b16 %v325, %v323
    %v394 = vpack.c.b16 %v328, %v326
    %v395 = vpack.c.b16 %v329, %v327
    %v396 = vpack.c.b16 %v332, %v330
    %v397 = vpack.c.b16 %v333, %v331
    %462 = vmatprep.subr.bf16.mxu0 %v335
    %463 = vmatpush1.bf16.msra.mxu0 %v334
    %464 = vmatprep.subr.bf16.mxu0 %v337
    %465 = vmatpush1.bf16.msra.mxu0 %v336
    %466 = vmatprep.subr.bf16.mxu0 %v339
    %467 = vmatpush1.bf16.msra.mxu0 %v338
    %468 = vmatprep.subr.bf16.mxu0 %v341
    %469 = vmatpush1.bf16.msra.mxu0 %v340
    %470 = vmatprep.subr.bf16.mxu0 %v343
    %471 = vmatpush1.bf16.msra.mxu0 %v342
    %472 = vmatprep.subr.bf16.mxu0 %v345
    %473 = vmatpush1.bf16.msra.mxu0 %v344
    %474 = vmatprep.subr.bf16.mxu0 %v347
    %475 = vmatpush1.bf16.msra.mxu0 %v346
    %476 = vmatprep.subr.bf16.mxu0 %v349
    %477 = vmatpush1.bf16.msra.mxu0 %v348
    %478 = vmatprep.subr.bf16.mxu0 %v351
    %479 = vmatpush1.bf16.msra.mxu0 %v350
    %480 = vmatprep.subr.bf16.mxu0 %v353
    %481 = vmatpush1.bf16.msra.mxu0 %v352
    %482 = vmatprep.subr.bf16.mxu0 %v355
    %483 = vmatpush1.bf16.msra.mxu0 %v354
    %484 = vmatprep.subr.bf16.mxu0 %v357
    %485 = vmatpush1.bf16.msra.mxu0 %v356
    %486 = vmatprep.subr.bf16.mxu0 %v359
    %487 = vmatpush1.bf16.msra.mxu0 %v358
    %488 = vmatprep.subr.bf16.mxu0 %v361
    %489 = vmatpush1.bf16.msra.mxu0 %v360
    %490 = vmatprep.subr.bf16.mxu0 %v363
    %491 = vmatpush1.bf16.msra.mxu0 %v362
    %492 = vmatprep.subr.bf16.mxu0 %v365
    %493 = vmatpush1.bf16.msra.mxu0 %v364
    %494 = vmatprep.mubr.bf16.mxu0 %v75
    %495 = vmatmul.mubr.bf16.gmra.mrb[0].mxu0 %v74
    %v496 = vpop.f32.mrb[0].mxu0
    %v497 = vadd.f32 0.0, %v496
    %v498 = vpop.f32.mrb[0].mxu0
    %v499 = vadd.f32 0.0, %v498
    %v500 = vpop.f32.mrb[0].mxu0
    %v501 = vpop.f32.mrb[0].mxu0
    %502 = vdwg.mxu0
    %503 = vmatprep.subr.bf16.mxu0 %v367
    %504 = vmatpush1.bf16.msra.mxu0 %v366
    %505 = vmatprep.subr.bf16.mxu0 %v369
    %506 = vmatpush1.bf16.msra.mxu0 %v368
    %507 = vmatprep.subr.bf16.mxu0 %v371
    %508 = vmatpush1.bf16.msra.mxu0 %v370
    %509 = vmatprep.subr.bf16.mxu0 %v373
    %510 = vmatpush1.bf16.msra.mxu0 %v372
    %511 = vmatprep.subr.bf16.mxu0 %v375
    %512 = vmatpush1.bf16.msra.mxu0 %v374
    %513 = vmatprep.subr.bf16.mxu0 %v377
    %514 = vmatpush1.bf16.msra.mxu0 %v376
    %515 = vmatprep.subr.bf16.mxu0 %v379
    %516 = vmatpush1.bf16.msra.mxu0 %v378
    %517 = vmatprep.subr.bf16.mxu0 %v381
    %518 = vmatpush1.bf16.msra.mxu0 %v380
    %519 = vmatprep.subr.bf16.mxu0 %v383
    %520 = vmatpush1.bf16.msra.mxu0 %v382
    %521 = vmatprep.subr.bf16.mxu0 %v385
    %522 = vmatpush1.bf16.msra.mxu0 %v384
    %523 = vmatprep.subr.bf16.mxu0 %v387
    %524 = vmatpush1.bf16.msra.mxu0 %v386
    %525 = vmatprep.subr.bf16.mxu0 %v389
    %526 = vmatpush1.bf16.msra.mxu0 %v388
    %527 = vmatprep.subr.bf16.mxu0 %v391
    %528 = vmatpush1.bf16.msra.mxu0 %v390
    %529 = vmatprep.subr.bf16.mxu0 %v393
    %530 = vmatpush1.bf16.msra.mxu0 %v392
    %531 = vmatprep.subr.bf16.mxu0 %v395
    %532 = vmatpush1.bf16.msra.mxu0 %v394
    %533 = vmatprep.subr.bf16.mxu0 %v397
    %534 = vmatpush1.bf16.msra.mxu0 %v396
    %535 = vmatprep.mubr.bf16.mxu0 %v77
    %536 = vmatmul.mubr.bf16.gmra.mrb[0].mxu0 %v76
    %v537 = vpop.f32.mrb[0].mxu0
    %v538 = vadd.f32 %v497, %v537
    %v539 = vpop.f32.mrb[0].mxu0
    %v540 = vadd.f32 %v499, %v539
    %v541 = vpop.f32.mrb[0].mxu0
    %v542 = vpop.f32.mrb[0].mxu0
    %543 = vdwg.mxu0
    %v544 = vld [vmem:[#allocation8] ss:$8 sm:$0x3]
    %s545 = scalar_lea.vmem [#allocation8], 1
    %v546 = vld [vmem:[%s545] ss:$8 sm:$0x3]
    %v547 = vrot.slane %v538, 4
    %v548 = vadd.f32 %v538, %v547
    %v549 = vrot.slane %v548, 2
    %v550 = vadd.f32 %v548, %v549
    %v551 = vrot.slane %v550, 1
    %v552 = vadd.f32 %v550, %v551
    %v553 = vrot.slane %v540, 4
    %v554 = vadd.f32 %v540, %v553
    %v555 = vrot.slane %v554, 2
    %v556 = vadd.f32 %v554, %v555
    %v557 = vrot.slane %v556, 1
    %v558 = vadd.f32 %v556, %v557
    %v559 = vmul.f32 %v538, %v538
    %v560 = vmul.f32 %v540, %v540
    %v561 = vrot.slane %v559, 4
    %v562 = vadd.f32 %v559, %v561
    %v563 = vrot.slane %v562, 2
    %v564 = vadd.f32 %v562, %v563
    %v565 = vrot.slane %v564, 1
    %v566 = vadd.f32 %v564, %v565
    %v567 = vrot.slane %v560, 4
    %v568 = vadd.f32 %v560, %v567
    %v569 = vrot.slane %v568, 2
    %v570 = vadd.f32 %v568, %v569
    %v571 = vrot.slane %v570, 1
    %v572 = vadd.f32 %v570, %v571
    %v573 = vmul.f32 %v552, 0.125
    %v574 = vmul.f32 %v558, 0.125
    %v575 = vmul.f32 %v566, 0.125
    %v576 = vmul.f32 %v572, 0.125
    %v577 = vmul.f32 %v573, %v573
    %v578 = vmul.f32 %v574, %v574
    %v579 = vsub.f32 %v575, %v577
    %v580 = vsub.f32 %v576, %v578
    %v581 = vmax.f32 %v579, 0.0
    %v582 = vmax.f32 %v580, 0.0
    %v583 = vadd.f32 %v581, 1e-05
    %v584 = vadd.f32 %v582, 1e-05
    %v585 = vrsqrt.pop %v583
    %v586 = vrsqrt.pop %v584
    %v588 = vlaneseq
    %v589 = vshrl.u32 %v588, 7
    %v590 = vsub.s32 0, %v589
    %v591 = vrot.slane %v544, %v590
    %v592 = vlaneseq
    %v593 = vshrl.u32 %v592, 7
    %v594 = vsub.s32 1, %v593
    %v595 = vrot.slane %v544, %v594
    %v598 = vmul.f32 %v585, %v591
    %v599 = vmul.f32 %v586, %v595
    %v600 = vmul.f32 %v573, %v598
    %v601 = vmul.f32 %v574, %v599
    %v604 = vcombine.low %v600, %v601
    %v606 = vunpack.c.l.s4 1966171168
    %v607 = vunpack.c.0.s8 %v606
    %v608 = vlaneseq
    %v609 = vshrl.u32 %v608, 7
    %v610 = vsub.s32 %v607, %v609
    %v611 = vrot.slane %v604, %v610
    %v613 = vunpack.c.l.s4 1966171168
    %v614 = vunpack.c.0.s8 %v613
    %v615 = vlaneseq
    %v616 = vshrl.u32 %v615, 7
    %v617 = vsub.s32 %v614, %v616
    %v618 = vrot.slane %v611, %v617
    %v620 = vsub.f32 %v546, %v618
    %v621 = vlaneseq
    %v622 = vshrl.u32 %v621, 7
    %v623 = vsub.s32 0, %v622
    %v624 = vrot.slane %v598, %v623
    %v625 = vlaneseq
    %v626 = vshrl.u32 %v625, 7
    %v627 = vsub.s32 0, %v626
    %v628 = vrot.slane %v599, %v627
    %v629 = vmul.f32 %v538, %v624
    %v630 = vmul.f32 %v540, %v628
    %v632 = vlaneseq
    %v633 = vshrl.u32 %v632, 7
    %v634 = vsub.s32 0, %v633
    %v635 = vrot.slane %v620, %v634
    %v636 = vlaneseq
    %v637 = vshrl.u32 %v636, 7
    %v638 = vsub.s32 1, %v637
    %v639 = vrot.slane %v620, %v638
    %v642 = vadd.f32 %v629, %v635
    %v643 = vadd.f32 %v630, %v639
    %vm644 = vcmp.ge.f32.partialorder %v642, 0.0
    %vm645 = vcmp.ge.f32.partialorder %v643, 0.0
    %v646 = vmul.f32 %v642, 0.2
    %v647 = vmul.f32 %v643, 0.2
    %v648 = vsel %vm644, %v642, %v646
    %v649 = vsel %vm645, %v643, %v647
    %v650 = vpack.c.bf16 %v648, %v648
    %v651 = vpack.c.bf16 %v649, %v649
    %v652 = vld [vmem:[#allocation7] sm:$0xf]
    %v653 = vld [vmem:[#allocation7 + $0x4] sm:$0xf]
    %v654 = vld [vmem:[#allocation7 + $0x8] sm:$0xf]
    %v655 = vld [vmem:[#allocation7 + $0xc] sm:$0xf]
    %v656 = vld [vmem:[#allocation7 + $0x10] sm:$0xf]
    %v657 = vld [vmem:[#allocation7 + $0x14] sm:$0xf]
    %v658 = vld [vmem:[#allocation7 + $0x18] sm:$0xf]
    %v659 = vld [vmem:[#allocation7 + $0x1c] sm:$0xf]
    %v660 = vld [vmem:[#allocation7 + $0x20] sm:$0xf]
    %v661 = vld [vmem:[#allocation7 + $0x24] sm:$0xf]
    %v662 = vld [vmem:[#allocation7 + $0x28] sm:$0xf]
    %v663 = vld [vmem:[#allocation7 + $0x2c] sm:$0xf]
    %v664 = vld [vmem:[#allocation7 + $0x30] sm:$0xf]
    %v665 = vld [vmem:[#allocation7 + $0x34] sm:$0xf]
    %v666 = vld [vmem:[#allocation7 + $0x38] sm:$0xf]
    %v667 = vld [vmem:[#allocation7 + $0x3c] sm:$0xf]
    %v668 = vld [vmem:[#allocation7 + $0x40] sm:$0xf]
    %v669 = vld [vmem:[#allocation7 + $0x44] sm:$0xf]
    %v670 = vld [vmem:[#allocation7 + $0x48] sm:$0xf]
    %v671 = vld [vmem:[#allocation7 + $0x4c] sm:$0xf]
    %v672 = vld [vmem:[#allocation7 + $0x50] sm:$0xf]
    %v673 = vld [vmem:[#allocation7 + $0x54] sm:$0xf]
    %v674 = vld [vmem:[#allocation7 + $0x58] sm:$0xf]
    %v675 = vld [vmem:[#allocation7 + $0x5c] sm:$0xf]
    %v676 = vld [vmem:[#allocation7 + $0x60] sm:$0xf]
    %v677 = vld [vmem:[#allocation7 + $0x64] sm:$0xf]
    %v678 = vld [vmem:[#allocation7 + $0x68] sm:$0xf]
    %v679 = vld [vmem:[#allocation7 + $0x6c] sm:$0xf]
    %v680 = vld [vmem:[#allocation7 + $0x70] sm:$0xf]
    %v681 = vld [vmem:[#allocation7 + $0x74] sm:$0xf]
    %v682 = vld [vmem:[#allocation7 + $0x78] sm:$0xf]
    %v683 = vld [vmem:[#allocation7 + $0x7c] sm:$0xf]
    %v716 = vunpack.c.l.b16 %v652
    %v717 = vunpack.c.l.b16 %v653
    %v718 = vunpack.c.l.b16 %v654
    %v719 = vunpack.c.l.b16 %v655
    %v720 = vunpack.c.l.b16 %v656
    %v721 = vunpack.c.l.b16 %v657
    %v722 = vunpack.c.l.b16 %v658
    %v723 = vunpack.c.l.b16 %v659
    %v724 = vunpack.c.l.b16 %v660
    %v725 = vunpack.c.l.b16 %v661
    %v726 = vunpack.c.l.b16 %v662
    %v727 = vunpack.c.l.b16 %v663
    %v728 = vunpack.c.l.b16 %v664
    %v729 = vunpack.c.l.b16 %v665
    %v730 = vunpack.c.l.b16 %v666
    %v731 = vunpack.c.l.b16 %v667
    %v732 = vunpack.c.l.b16 %v668
    %v733 = vunpack.c.l.b16 %v669
    %v734 = vunpack.c.l.b16 %v670
    %v735 = vunpack.c.l.b16 %v671
    %v736 = vunpack.c.l.b16 %v672
    %v737 = vunpack.c.l.b16 %v673
    %v738 = vunpack.c.l.b16 %v674
    %v739 = vunpack.c.l.b16 %v675
    %v740 = vunpack.c.l.b16 %v676
    %v741 = vunpack.c.l.b16 %v677
    %v742 = vunpack.c.l.b16 %v678
    %v743 = vunpack.c.l.b16 %v679
    %v744 = vunpack.c.l.b16 %v680
    %v745 = vunpack.c.l.b16 %v681
    %v746 = vunpack.c.l.b16 %v682
    %v747 = vunpack.c.l.b16 %v683
    %v748 = vpack.c.b16 %v717, %v716
    %v749 = vpack.c.b16 %v719, %v718
    %v750 = vpack.c.b16 %v721, %v720
    %v751 = vpack.c.b16 %v723, %v722
    %v752 = vpack.c.b16 %v725, %v724
    %v753 = vpack.c.b16 %v727, %v726
    %v754 = vpack.c.b16 %v729, %v728
    %v755 = vpack.c.b16 %v731, %v730
    %v756 = vpack.c.b16 %v733, %v732
    %v757 = vpack.c.b16 %v735, %v734
    %v758 = vpack.c.b16 %v737, %v736
    %v759 = vpack.c.b16 %v739, %v738
    %v760 = vpack.c.b16 %v741, %v740
    %v761 = vpack.c.b16 %v743, %v742
    %v762 = vpack.c.b16 %v745, %v744
    %v763 = vpack.c.b16 %v747, %v746
    %780 = vmatprep.subr.bf16.mxu0 0
    %781 = vmatpush1.bf16.msra.mxu0 %v748
    %782 = vmatprep.subr.bf16.mxu0 0
    %783 = vmatpush1.bf16.msra.mxu0 %v749
    %784 = vmatprep.subr.bf16.mxu0 0
    %785 = vmatpush1.bf16.msra.mxu0 %v750
    %786 = vmatprep.subr.bf16.mxu0 0
    %787 = vmatpush1.bf16.msra.mxu0 %v751
    %788 = vmatprep.subr.bf16.mxu0 0
    %789 = vmatpush1.bf16.msra.mxu0 %v752
    %790 = vmatprep.subr.bf16.mxu0 0
    %791 = vmatpush1.bf16.msra.mxu0 %v753
    %792 = vmatprep.subr.bf16.mxu0 0
    %793 = vmatpush1.bf16.msra.mxu0 %v754
    %794 = vmatprep.subr.bf16.mxu0 0
    %795 = vmatpush1.bf16.msra.mxu0 %v755
    %796 = vmatprep.subr.bf16.mxu0 0
    %797 = vmatpush1.bf16.msra.mxu0 %v756
    %798 = vmatprep.subr.bf16.mxu0 0
    %799 = vmatpush1.bf16.msra.mxu0 %v757
    %800 = vmatprep.subr.bf16.mxu0 0
    %801 = vmatpush1.bf16.msra.mxu0 %v758
    %802 = vmatprep.subr.bf16.mxu0 0
    %803 = vmatpush1.bf16.msra.mxu0 %v759
    %804 = vmatprep.subr.bf16.mxu0 0
    %805 = vmatpush1.bf16.msra.mxu0 %v760
    %806 = vmatprep.subr.bf16.mxu0 0
    %807 = vmatpush1.bf16.msra.mxu0 %v761
    %808 = vmatprep.subr.bf16.mxu0 0
    %809 = vmatpush1.bf16.msra.mxu0 %v762
    %810 = vmatprep.subr.bf16.mxu0 0
    %811 = vmatpush1.bf16.msra.mxu0 %v763
    %812 = vmatprep.mubr.bf16.mxu0 %v651
    %813 = vmatmul.mubr.bf16.gmra.mrb[0].mxu0 %v650
    %v814 = vpop.f32.mrb[0].mxu0
    %v815 = vadd.f32 0.0, %v814
    %v816 = vpop.f32.mrb[0].mxu0
    %v817 = vpop.f32.mrb[0].mxu0
    %v818 = vpop.f32.mrb[0].mxu0
    %819 = vdwg.mxu0
    %v820 = vld [vmem:[#allocation8 + $0x2] ss:$0 sm:$0xff]
    %v821 = vld [vmem:[#allocation8 + $0x3] ss:$0 sm:$0xff]
    %v822 = vrot.slane %v815, 4
    %v823 = vadd.f32 %v815, %v822
    %v824 = vrot.slane %v823, 2
    %v825 = vadd.f32 %v823, %v824
    %v826 = vrot.slane %v825, 1
    %v827 = vadd.f32 %v825, %v826
    %v828 = vmul.f32 %v815, %v815
    %v829 = vrot.slane %v828, 4
    %v830 = vadd.f32 %v828, %v829
    %v831 = vrot.slane %v830, 2
    %v832 = vadd.f32 %v830, %v831
    %v833 = vrot.slane %v832, 1
    %v834 = vadd.f32 %v832, %v833
    %v835 = vmul.f32 %v827, 0.125
    %v836 = vmul.f32 %v834, 0.125
    %v837 = vmul.f32 %v835, %v835
    %v838 = vsub.f32 %v836, %v837
    %v839 = vmax.f32 %v838, 0.0
    %v840 = vadd.f32 %v839, 1e-05
    %v841 = vrsqrt.pop %v840
    %v842 = vmul.f32 %v841, %v820
    %v843 = vmul.f32 %v835, %v842
    %v844 = vsub.f32 %v821, %v843
    %v845 = vmul.f32 %v815, %v842
    %v846 = vadd.f32 %v845, %v844
    %vm847 = vcmp.ge.f32.partialorder %v846, 0.0
    %v848 = vmul.f32 %v846, 0.2
    %v849 = vsel %vm847, %v846, %v848
    %v850 = vld [vmem:[#allocation8 + $0x4] ss:$0 sm:$0xff]
    %851 = vmatprep.subr.mxu0 0.0
    %852 = vmatpush1.xpose.msra.mxu0 %v849
    %853 = vmatprep.subr.mxu0 0.0
    %854 = vmatpush1.xpose.msra.mxu0 0.0
    %855 = vmatprep.subr.mxu0 0.0
    %856 = vmatpush1.xpose.msra.mxu0 0.0
    %857 = vmatprep.subr.mxu0 0.0
    %858 = vmatpush1.xpose.msra.mxu0 0.0
    %859 = vmatprep.subr.mxu0 0.0
    %860 = vmatpush1.xpose.msra.mxu0 0.0
    %861 = vmatprep.subr.mxu0 0.0
    %862 = vmatpush1.xpose.msra.mxu0 0.0
    %863 = vmatprep.subr.mxu0 0.0
    %864 = vmatpush1.xpose.msra.mxu0 0.0
    %865 = vmatprep.subr.mxu0 0.0
    %866 = vmatpush1.xpose.msra.mxu0 0.0
    %867 = vmatprep.subr.mxu0 0.0
    %868 = vmatpush1.xpose.msra.mxu0 0.0
    %869 = vmatprep.subr.mxu0 0.0
    %870 = vmatpush1.xpose.msra.mxu0 0.0
    %871 = vmatprep.subr.mxu0 0.0
    %872 = vmatpush1.xpose.msra.mxu0 0.0
    %873 = vmatprep.subr.mxu0 0.0
    %874 = vmatpush1.xpose.msra.mxu0 0.0
    %875 = vmatprep.subr.mxu0 0.0
    %876 = vmatpush1.xpose.msra.mxu0 0.0
    %877 = vmatprep.subr.mxu0 0.0
    %878 = vmatpush1.xpose.msra.mxu0 0.0
    %879 = vmatprep.subr.mxu0 0.0
    %880 = vmatpush1.xpose.msra.mxu0 0.0
    %881 = vmatprep.subr.mxu0 0.0
    %882 = vmatpush1.xpose.msra.mxu0 0.0
    %883 = vmatprep.subr.mxu0 0.0
    %884 = vmatpush1.xpose.msra.mxu0 0.0
    %885 = vmatprep.subr.mxu0 0.0
    %886 = vmatpush1.xpose.msra.mxu0 0.0
    %887 = vmatprep.subr.mxu0 0.0
    %888 = vmatpush1.xpose.msra.mxu0 0.0
    %889 = vmatprep.subr.mxu0 0.0
    %890 = vmatpush1.xpose.msra.mxu0 0.0
    %891 = vmatprep.subr.mxu0 0.0
    %892 = vmatpush1.xpose.msra.mxu0 0.0
    %893 = vmatprep.subr.mxu0 0.0
    %894 = vmatpush1.xpose.msra.mxu0 0.0
    %895 = vmatprep.subr.mxu0 0.0
    %896 = vmatpush1.xpose.msra.mxu0 0.0
    %897 = vmatprep.subr.mxu0 0.0
    %898 = vmatpush1.xpose.msra.mxu0 0.0
    %899 = vmatprep.subr.mxu0 0.0
    %900 = vmatpush1.xpose.msra.mxu0 0.0
    %901 = vmatprep.subr.mxu0 0.0
    %902 = vmatpush1.xpose.msra.mxu0 0.0
    %903 = vmatprep.subr.mxu0 0.0
    %904 = vmatpush1.xpose.msra.mxu0 0.0
    %905 = vmatprep.subr.mxu0 0.0
    %906 = vmatpush1.xpose.msra.mxu0 0.0
    %907 = vmatprep.subr.mxu0 0.0
    %908 = vmatpush1.xpose.msra.mxu0 0.0
    %909 = vmatprep.subr.mxu0 0.0
    %910 = vmatpush1.xpose.msra.mxu0 0.0
    %911 = vmatprep.subr.mxu0 0.0
    %912 = vmatpush1.xpose.msra.mxu0 0.0
    %913 = vmatprep.subr.mxu0 0.0
    %914 = vmatpush1.xpose.msra.mxu0 0.0
    %915 = vmatprep.mubr.f32.mxu0 0.0
    %916 = vmatmul.mubr.f32.gmra.mrb[0].mxu0 %v850
    %v917 = vpop.f32.mrb[0].mxu0
    %v918 = vadd.f32 0.0, %v917
    %v919 = vpop.f32.mrb[0].mxu0
    %920 = vdwg.mxu0
    %v921 = vld [vmem:[#allocation8 + $0x5] ss:$0 sm:$0xff]
    %v922 = vld [vmem:[#allocation8 + $0x6] ss:$0 sm:$0xff]
    %vm923 = vcmask 57344
    %v924 = vsel %vm923, %v918, 0.0
    %925 = vadd.xlane.f32.xlu0 %v924
    %v926 = vpop.xlane.xlu0 %925
    %v927 = vmul.f32 %v918, %v918
    %v928 = vsel %vm923, %v927, 0.0
    %929 = vadd.xlane.f32.xlu0 %v928
    %v930 = vpop.xlane.xlu0 %929
    %v931 = vmul.f32 %v926, 0.125
    %v932 = vmul.f32 %v930, 0.125
    %v933 = vmul.f32 %v931, %v931
    %v934 = vsub.f32 %v932, %v933
    %v935 = vmax.f32 %v934, 0.0
    %v936 = vadd.f32 %v935, 1e-05
    %v937 = vrsqrt.pop %v936
    %v938 = vmul.f32 %v937, %v921
    %v939 = vmul.f32 %v931, %v938
    %v940 = vsub.f32 %v922, %v939
    %942 = vset.pattern.permute.xlu0 0
    %943 = vperm.xlu0 %942, %v938
    %v944 = vpop.permute.xlu0 %943
    %v946 = vmul.f32 %v918, %v944
    %948 = vset.pattern.permute.xlu0 0
    %949 = vperm.xlu0 %948, %v940
    %v950 = vpop.permute.xlu0 %949
    %v952 = vadd.f32 %v946, %v950
    %v953 = vmul.f32 %v952, 0.5
    %v954 = vtanh.pop %v953
    %v955 = vadd.f32 %v954, 1.0
    %v956 = vmul.f32 %v955, 0.5
    %957 = vst.msk [vmem:[#allocation10] sm:$0x1] %vm923, %v956
    // Predicated region
    $region34: #{tpu_custom_call.1} parent=1 // pred_check
      _
    $region35: #{tpu_custom_call.1} parent=1 // pred_check_branch
      %959 = sbr.rel (0) target = $region37
    $region36: #{tpu_custom_call.1} parent=1 // pred_region
      %s961 = ssub.s32 16, 16
      %962 = vsyncadd [#allocation4], %s961
      %s964 = sshll.u32 [#allocation10], 4
      %s965 = int_to_ptr.vmem [resolvable:$true] %s964
      %967 = dma.vmem_to_hbm [thread:$0]  %s965, 16, %s4, [#allocation4]
    $region37: #{tpu_custom_call.1} parent=1 // pred_fallthru
      _
    // Predicated region
    $region38: #{tpu_custom_call.1} parent=1 // pred_check
      _
    $region39: #{tpu_custom_call.1} parent=1 // pred_check_branch
      %969 = sbr.rel (0) target = $region41
    $region40: #{tpu_custom_call.1} parent=1 // pred_region
      %970 = dma.done [#allocation4], 16
    $region41: #{tpu_custom_call.1} parent=1 // pred_fallthru
      _
    %971 = vsyncpa [#allocation3], 1
    %972 = vsyncpa [#allocation6], 1
    %973 = vsyncpa [#allocation9], 1
    %974 = vsyncpa [#allocation4], 1

</llo_original>
